<compile_context>
chip_gen: v6e
topology: v6e:2x2x1
jax: 0.10.0
libtpu: 0.0.40
codegen_flags: <defaults>
</compile_context>

<pallas_src>
import jax
import jax.numpy as jnp
from jax.experimental import pallas as pl
from jax.experimental.pallas import tpu as pltpu


def _round_up(a: int, b: int) -> int:
    return -(-a // b) * b


def _tpu_generation() -> str:
    try:
        kind = jax.devices()[0].device_kind.lower()
    except Exception:
        return "unknown"
    for g in ("v7", "v6", "v5"):
        if g in kind:
            return g
    return "unknown"


# Per-generation block / VMEM budgets (bytes) and TensorCore count.
_GEN_CONFIG = {
    # v7x: 64 MiB physical VMEM, 2 TCs -> moderate blocks, ensure 2+ blocks.
    "v7": dict(max_block_bytes=8 * 1024 * 1024,
               vmem_limit_bytes=48 * 1024 * 1024, num_tc=2),
    # v6e / v5e: 128 MiB physical VMEM, single TC -> biggest blocks, no split.
    "v6": dict(max_block_bytes=12 * 1024 * 1024,
               vmem_limit_bytes=64 * 1024 * 1024, num_tc=1),
    "v5": dict(max_block_bytes=12 * 1024 * 1024,
               vmem_limit_bytes=64 * 1024 * 1024, num_tc=1),
    # Unknown: conservative (fits the smallest-VMEM part).
    "unknown": dict(max_block_bytes=6 * 1024 * 1024,
                    vmem_limit_bytes=32 * 1024 * 1024, num_tc=2),
}


def _make_var_kernel(T: int, tt: int, slab: int, needs_mask: bool):
    """Kernel over one (nb, tt, tm) input block; output block (nb, tm)."""
    n_slabs = tt // slab          # tt is a multiple of slab (static)
    inv_t = 1.0 / T               # compile-time constant

    def kernel(x_ref, o_ref, s_ref, ss_ref, shift_ref):
        t_idx = pl.program_id(2)

        @pl.when(t_idx == 0)
        def _():
            # Shift by the first view: Var(x) == Var(x - x0), keeps the
            # single-pass form numerically safe.
            shift_ref[...] = x_ref[:, 0, :].astype(jnp.float32)
            s_ref[...] = jnp.zeros_like(s_ref)
            ss_ref[...] = jnp.zeros_like(ss_ref)

        shift = shift_ref[...][:, None, :]             # (nb, 1, tm)

        def slab_body(i, carry):
            s, ss = carry
            start = pl.multiple_of(i * slab, slab)
            xs = x_ref[:, pl.ds(start, slab), :].astype(jnp.float32)
            d = xs - shift
            if needs_mask:
                # Mask T rows padded past the true extent (sublane padding
                # and/or ragged last T block).
                row = jax.lax.broadcasted_iota(jnp.int32, (1, slab, 1), 1)
                valid = (t_idx * tt + start + row) < T
                d = jnp.where(valid, d, 0.0)
            s = s + jnp.sum(d, axis=1)                  # (nb, tm)
            ss = ss + jnp.sum(d * d, axis=1)            # (nb, tm)
            return s, ss

        s, ss = jax.lax.fori_loop(
            0, n_slabs, slab_body, (s_ref[...], ss_ref[...]),
            unroll=(n_slabs <= 8))
        s_ref[...] = s
        ss_ref[...] = ss

        @pl.when(t_idx == pl.num_programs(2) - 1)
        def _():
            mean_d = s * inv_t
            var = ss * inv_t - mean_d * mean_d
            var = jnp.maximum(var, 0.0)                 # guard round-off
            o_ref[...] = var.astype(o_ref.dtype)

    return kernel


def variance_layer(x, *, max_block_bytes=None, vmem_limit_bytes=None):
    """x: (N, T, D, C, H, W) -> (N, D, C, H, W), population variance over dim 1."""
    N, T, D, C, H, W = x.shape
    M = D * C * H * W
    x2 = x.reshape(N, T, M)

    cfg = _GEN_CONFIG.get(_tpu_generation(), _GEN_CONFIG["unknown"])
    if max_block_bytes is None:
        max_block_bytes = cfg["max_block_bytes"]
    if vmem_limit_bytes is None:
        vmem_limit_bytes = cfg["vmem_limit_bytes"]
    num_tc = cfg["num_tc"]

    itemsize = x.dtype.itemsize
    # Sublane tile of the input dtype: 8 (f32), 16 (bf16), 32 (int8).
    slab = max(8, 32 // max(itemsize, 1))

    # ---- Tile selection (pure HBM-bandwidth kernel) -------------------------
    nb = min(N, 8)                         # 8 sublanes -> dense output stores

    # T block: the full (sublane-padded) T if it fits alongside a reasonable
    # lane width, otherwise a bounded multiple of `slab` + a grid axis over T.
    m_pad = _round_up(M, 128)
    min_tm = min(m_pad, 512)
    tt_full = _round_up(T, slab)
    if nb * tt_full * min_tm * itemsize <= max_block_bytes:
        tt = tt_full
    else:
        tt = max(slab,
                 (max_block_bytes // (nb * min_tm * itemsize)) // slab * slab)
    grid_t = pl.cdiv(T, tt)

    # M block: as wide as the (dtype- and padding-aware) budget allows.
    tm = (max_block_bytes // (nb * tt * itemsize)) // 128 * 128
    tm = max(128, tm)
    if tm >= M:
        tm = M                              # full extent (covers M % 128 != 0)
    grid_n = pl.cdiv(N, nb)
    grid_m = pl.cdiv(M, tm)

    # Multi-TensorCore chips only (v7x): make sure both cores get work, but
    # keep tm maximal otherwise (lane-dense output / long DMA rows).
    if num_tc >= 2 and grid_n * grid_m < num_tc and M >= num_tc * 512:
        tm = max(512, _round_up(pl.cdiv(M, num_tc), 128))
        grid_m = pl.cdiv(M, tm)

    needs_mask = (grid_t * tt != T)         # sublane padding / ragged last block
    grid = (grid_n, grid_m, grid_t)

    kernel = _make_var_kernel(T=T, tt=tt, slab=slab, needs_mask=needs_mask)

    cost = pl.CostEstimate(
        flops=4 * N * T * M,
        transcendentals=0,
        bytes_accessed=N * T * M * itemsize + N * M * itemsize,
    )

    out2 = pl.pallas_call(
        kernel,
        out_shape=jax.ShapeDtypeStruct((N, M), x.dtype),
        grid_spec=pltpu.PrefetchScalarGridSpec(
            num_scalar_prefetch=0,
            grid=grid,
            in_specs=[pl.BlockSpec((nb, tt, tm), lambda n, m, t: (n, t, m))],
            out_specs=pl.BlockSpec((nb, tm), lambda n, m, t: (n, m)),
            scratch_shapes=[
                pltpu.VMEM((nb, tm), jnp.float32),   # sum(d)
                pltpu.VMEM((nb, tm), jnp.float32),   # sum(d*d)
                pltpu.VMEM((nb, tm), jnp.float32),   # shift = x[:, 0, :]
            ],
        ),
        compiler_params=pltpu.CompilerParams(
            dimension_semantics=("parallel", "parallel", "arbitrary"),
            vmem_limit_bytes=vmem_limit_bytes,
        ),
        cost_estimate=cost,
    )(x2)

    return out2.reshape(N, D, C, H, W)


if __name__ == "__main__":
    key = jax.random.PRNGKey(0)
    # Small shapes consistent with (N, T, D, C, H, W)
    N, T, D, C, H, W = 2, 4, 3, 4, 8, 16
    x = jax.random.normal(key, (N, T, D, C, H, W), dtype=jnp.float32)

    out = variance_layer(x)
    out = jax.block_until_ready(out)

    # Reference check (population variance over dim 1)
    ref = jnp.var(x, axis=1, ddof=0)
    assert out.shape == (N, D, C, H, W)
    assert jnp.allclose(out, ref, atol=1e-5, rtol=1e-5)

    print("KERNEL_OK")
</pallas_src>

<mosaic_0001>
module attributes {stable_mosaic.version = 11 : i64} {
  func.func @kernel(%arg0: i32, %arg1: i32, %arg2: i32, %arg3: memref<2x8x768xf32, #tpu.memory_space<vmem>>, %arg4: memref<2x768xf32, #tpu.memory_space<vmem>>, %arg5: memref<2x768xf32, #tpu.memory_space<vmem>>, %arg6: memref<2x768xf32, #tpu.memory_space<vmem>>, %arg7: memref<2x768xf32, #tpu.memory_space<vmem>>) attributes {dimension_semantics = [#tpu.dimension_semantics<parallel>, #tpu.dimension_semantics<parallel>, #tpu.dimension_semantics<arbitrary>], iteration_bounds = array<i64: 1, 2, 1>, scalar_prefetch = 0 : i64, scratch_operands = 3 : i64, tpu.core_type = #tpu.core_type<tc>, window_params = [{transform_indices = @transform_0, window_bounds = array<i64: 2, 8, 768>}, {transform_indices = @transform_1, window_bounds = array<i64: 2, 768>}]} {
    %c0_i32 = arith.constant 0 : i32
    %0 = arith.cmpi eq, %arg2, %c0_i32 : i32
    %1 = arith.extui %0 : i1 to i32
    %c0_i32_0 = arith.constant 0 : i32
    %2 = arith.cmpi ne, %1, %c0_i32_0 : i32
    scf.if %2 {
      %c0_18 = arith.constant 0 : index
      %c0_19 = arith.constant 0 : index
      %c0_20 = arith.constant 0 : index
      %34 = vector.load %arg3[%c0_18, %c0_19, %c0_20] : memref<2x8x768xf32, #tpu.memory_space<vmem>>, vector<2x1x768xf32>
      %35 = vector.shape_cast %34 : vector<2x1x768xf32> to vector<2x768xf32>
      %c0_21 = arith.constant 0 : index
      %c0_22 = arith.constant 0 : index
      %36 = vector.load %arg7[%c0_21, %c0_22] : memref<2x768xf32, #tpu.memory_space<vmem>>, vector<2x768xf32>
      tpu.vector_store %arg7[%c0_21, %c0_22], %35 {strides = array<i32>} : memref<2x768xf32, #tpu.memory_space<vmem>>, vector<2x768xf32>,
      %cst_23 = arith.constant 0.000000e+00 : f32
      %37 = vector.broadcast %cst_23 : f32 to vector<2x768xf32>
      %c0_24 = arith.constant 0 : index
      %c0_25 = arith.constant 0 : index
      %38 = vector.load %arg5[%c0_24, %c0_25] : memref<2x768xf32, #tpu.memory_space<vmem>>, vector<2x768xf32>
      tpu.vector_store %arg5[%c0_24, %c0_25], %37 {strides = array<i32>} : memref<2x768xf32, #tpu.memory_space<vmem>>, vector<2x768xf32>,
      %cst_26 = arith.constant 0.000000e+00 : f32
      %39 = vector.broadcast %cst_26 : f32 to vector<2x768xf32>
      %c0_27 = arith.constant 0 : index
      %c0_28 = arith.constant 0 : index
      %40 = vector.load %arg6[%c0_27, %c0_28] : memref<2x768xf32, #tpu.memory_space<vmem>>, vector<2x768xf32>
      tpu.vector_store %arg6[%c0_27, %c0_28], %39 {strides = array<i32>} : memref<2x768xf32, #tpu.memory_space<vmem>>, vector<2x768xf32>,
    } else {
    }
    %c0 = arith.constant 0 : index
    %c0_1 = arith.constant 0 : index
    %3 = vector.load %arg7[%c0, %c0_1] : memref<2x768xf32, #tpu.memory_space<vmem>>, vector<2x768xf32>
    %4 = vector.shape_cast %3 : vector<2x768xf32> to vector<2x1x768xf32>
    %c0_2 = arith.constant 0 : index
    %c0_3 = arith.constant 0 : index
    %5 = vector.load %arg5[%c0_2, %c0_3] : memref<2x768xf32, #tpu.memory_space<vmem>>, vector<2x768xf32>
    %c0_4 = arith.constant 0 : index
    %c0_5 = arith.constant 0 : index
    %6 = vector.load %arg6[%c0_4, %c0_5] : memref<2x768xf32, #tpu.memory_space<vmem>>, vector<2x768xf32>
    %c0_i32_6 = arith.constant 0 : i32
    %c8_i32 = arith.constant 8 : i32
    %7 = arith.muli %c0_i32_6, %c8_i32 : i32
    %8 = tpu.assume_multiple %7, 8 : i32
    %c0_7 = arith.constant 0 : index
    %9 = arith.index_cast %8 : i32 to index
    %c0_8 = arith.constant 0 : index
    %10 = vector.load %arg3[%c0_7, %9, %c0_8] : memref<2x8x768xf32, #tpu.memory_space<vmem>>, vector<2x8x768xf32>
    %11 = vector.broadcast %4 : vector<2x1x768xf32> to vector<2x8x768xf32>
    %12 = arith.subf %10, %11 : vector<2x8x768xf32>
    %13 = tpu.iota {dimensions = array<i32: 1>} : vector<1x8x1xi32>
    %c8_i32_9 = arith.constant 8 : i32
    %14 = arith.muli %arg2, %c8_i32_9 : i32
    %15 = arith.addi %14, %8 : i32
    %16 = vector.broadcast %15 : i32 to vector<1x8x1xi32>
    %17 = arith.addi %16, %13 : vector<1x8x1xi32>
    %c4_i32 = arith.constant 4 : i32
    %18 = vector.broadcast %c4_i32 : i32 to vector<1x8x1xi32>
    %19 = arith.cmpi slt, %17, %18 : vector<1x8x1xi32>
    %cst = arith.constant 0.000000e+00 : f32
    %20 = vector.shape_cast %19 : vector<1x8x1xi1> to vector<1x8x1xi1>
    %21 = vector.broadcast %20 : vector<1x8x1xi1> to vector<2x8x768xi1>
    %22 = vector.broadcast %cst : f32 to vector<2x8x768xf32>
    %23 = arith.select %21, %12, %22 : vector<2x8x768xi1>, vector<2x8x768xf32>
    %cst_10 = arith.constant dense<0.000000e+00> : vector<2x768xf32>
    %24 = vector.multi_reduction <add>, %23, %cst_10 [1] : vector<2x8x768xf32> to vector<2x768xf32>
    %25 = arith.addf %5, %24 : vector<2x768xf32>
    %26 = arith.mulf %23, %23 : vector<2x8x768xf32>
    %cst_11 = arith.constant dense<0.000000e+00> : vector<2x768xf32>
    %27 = vector.multi_reduction <add>, %26, %cst_11 [1] : vector<2x8x768xf32> to vector<2x768xf32>
    %28 = arith.addf %6, %27 : vector<2x768xf32>
    %c1_i32 = arith.constant 1 : i32
    %c0_12 = arith.constant 0 : index
    %c0_13 = arith.constant 0 : index
    %29 = vector.load %arg5[%c0_12, %c0_13] : memref<2x768xf32, #tpu.memory_space<vmem>>, vector<2x768xf32>
    tpu.vector_store %arg5[%c0_12, %c0_13], %25 {strides = array<i32>} : memref<2x768xf32, #tpu.memory_space<vmem>>, vector<2x768xf32>,
    %c0_14 = arith.constant 0 : index
    %c0_15 = arith.constant 0 : index
    %30 = vector.load %arg6[%c0_14, %c0_15] : memref<2x768xf32, #tpu.memory_space<vmem>>, vector<2x768xf32>
    tpu.vector_store %arg6[%c0_14, %c0_15], %28 {strides = array<i32>} : memref<2x768xf32, #tpu.memory_space<vmem>>, vector<2x768xf32>,
    %c0_i32_16 = arith.constant 0 : i32
    %31 = arith.cmpi eq, %arg2, %c0_i32_16 : i32
    %32 = arith.extui %31 : i1 to i32
    %c0_i32_17 = arith.constant 0 : i32
    %33 = arith.cmpi ne, %32, %c0_i32_17 : i32
    scf.if %33 {
      %cst_18 = arith.constant 2.500000e-01 : f32
      %34 = vector.broadcast %cst_18 : f32 to vector<2x768xf32>
      %35 = arith.mulf %25, %34 : vector<2x768xf32>
      %cst_19 = arith.constant 2.500000e-01 : f32
      %36 = vector.broadcast %cst_19 : f32 to vector<2x768xf32>
      %37 = arith.mulf %28, %36 : vector<2x768xf32>
      %38 = arith.mulf %35, %35 : vector<2x768xf32>
      %39 = arith.subf %37, %38 : vector<2x768xf32>
      %cst_20 = arith.constant 0.000000e+00 : f32
      %40 = vector.broadcast %cst_20 : f32 to vector<2x768xf32>
      %41 = arith.maximumf %39, %40 : vector<2x768xf32>
      %c0_21 = arith.constant 0 : index
      %c0_22 = arith.constant 0 : index
      %42 = vector.load %arg4[%c0_21, %c0_22] : memref<2x768xf32, #tpu.memory_space<vmem>>, vector<2x768xf32>
      tpu.vector_store %arg4[%c0_21, %c0_22], %41 {strides = array<i32>} : memref<2x768xf32, #tpu.memory_space<vmem>>, vector<2x768xf32>,
    } else {
    }
    return
  }
  func.func @transform_0(%arg0: i32, %arg1: i32, %arg2: i32) -> (i32, i32, i32) {
    %c0_i32 = arith.constant 0 : i32
    return %arg0, %arg2, %arg1 : i32, i32, i32
  }
  func.func @transform_1(%arg0: i32, %arg1: i32, %arg2: i32) -> (i32, i32) {
    %c0_i32 = arith.constant 0 : i32
    return %arg0, %arg1 : i32, i32
  }
}

</mosaic_0001>

<llo_original>
// kernel: tpu_custom_call.1
$region0: #{tpu_custom_call.1}
  #allocation0 [shape = 'u32[]', space=smem, size = 0x4, offset = 0x4, fixed_abs, tag = 'smem constant byte address 0x4 - core index']
  #allocation1 [shape = 'u32[144,128]{1,0:T(1,128)}', space=vmem, size = 0x12000, scoped, tag = 'internal scratch']
  #allocation2 [shape = 'f32[2,768]{1,0:T(2,128)}', space=vmem, size = 0x1800, scoped, tag = 'scratch operand']
  #allocation3 [shape = 'f32[2,768]{1,0:T(2,128)}', space=vmem, size = 0x1800, scoped, tag = 'scratch operand']
  #allocation4 [shape = 'f32[2,768]{1,0:T(2,128)}', space=vmem, size = 0x1800, scoped, tag = 'scratch operand']
  #allocation9 [shape = 's32[]', space=sflag, size = 0x4, offset = 0, fixed_abs, tag = 'sflag constant byte address 0x0 - dummy sync flag']
  %s0 = inlined_call_operand.hbm [shape: f32[2,4,1536], index: 0, kind: input, shape index: {}]
  %s1 = inlined_call_operand.hbm [shape: f32[2,1536], index: 1, kind: output, shape index: {}]
  %s2 = sld [smem:[#allocation0]]
  $region49: #{tpu_custom_call.1} parent=0
    _
  %s4 = ssub.s32 1, %s2
  %s5 = scalar_select 0, %s4, %s2
  $region1: #{tpu_custom_call.1} parent=0
    #allocation5 [shape = 'u8[98304]{0}', space=vmem, size = 0x18000, scoped, tag = 'input window, operand 0']
    #allocation6 [shape = 's32[2]{0}', space=sflag, size = 0x8, scoped, tag = 'scoped memory for tpu_custom_call.1']
    #allocation7 [shape = 's32[2]{0}', space=sflag, size = 0x8, scoped, tag = 'scoped memory for tpu_custom_call.1']
    #allocation8 [shape = 'u8[12288]{0}', space=vmem, size = 0x3000, scoped, tag = 'output window, operand 0']
    %6 = vsyncpa [#allocation6], 0
    %s7 = scalar_lea.sflag [#allocation6], 1
    %8 = vsyncpa %s7, 0
    %9 = vsyncpa [#allocation7], 0
    %s10 = scalar_lea.sflag [#allocation7], 1
    %11 = vsyncpa %s10, 0
    loop: start=0, step=1, limit=4
    $region2: #{tpu_custom_call.1} parent=1 // loop_pre_header
      _
    $region3: #{tpu_custom_call.1} parent=1 // loop_header
      %s13 = sphi 0, %s17
      %p14 = scmp.ge.s32.totalorder %s13, 4
      %s20 = sphi 0, %s39
      %s21 = sphi 0, %s35
      %s22 = sphi 0, %s31
      %s23 = sphi 0, %s20
      %s24 = sphi 0, %s21
      %s25 = sphi 0, %s22
      %s26 = sphi 0, %s23
      %s27 = sphi 0, %s24
      %s28 = sphi 0, %s25
      %s46 = sphi 0, %s48
      %s49 = sphi 0, %s46
      %s50 = sphi 0, %s49
      %s66 = sphi 0, %s50
      %s74 = sphi 0, %s76
      %s77 = sphi 0, %s74
      %s78 = sphi 0, %s77
      %s94 = sphi 0, %s78
    $region4: #{tpu_custom_call.1} parent=1 // loop_header_branch
      %16 = sbr.rel (%p14) target = $region8
    $region5: #{tpu_custom_call.1} parent=1 // loop_body
      %s18 = ssub.s32 %s13, 1
      %s19 = ssub.s32 %s13, 2
      %s29 = sadd.s32 1, %s22
      %p30 = scmp.ge.s32.totalorder %s29, 1
      %s31 = scalar_select %p30, 0, %s29
      %s32 = sadd.s32 1, %s21
      %s33 = scalar_select %p30, %s32, %s21
      %p34 = scmp.ge.s32.totalorder %s33, 2
      %s35 = scalar_select %p34, 0, %s33
      %s36 = sadd.s32 1, %s20
      %s37 = scalar_select %p34, %s36, %s20
      %p38 = scmp.ge.s32.totalorder %s37, 1
      %s39 = scalar_select %p38, 0, %s37
      %s40 = ssub.s32 %s20, %s39
      %s41 = ssub.s32 %s22, %s31
      %s42 = sor.u32 %s40, %s41
      %s43 = ssub.s32 %s21, %s35
      %s44 = sor.u32 %s42, %s43
      %p45 = scmp.eq.s32.totalorder %s44, 0
      %s47 = sadd.s32 %s46, 1
      %s48 = scalar_select %p45, %s46, %s47
      %p51 = pneg %p45
      %p52 = scmp.eq.s32.totalorder %s13, 1
      %p53 = por %p51, %p52
      %p54 = scmp.ne.s32.totalorder %s46, %s49
      %p55 = scmp.eq.s32.totalorder %s13, 0
      %p56 = por %p54, %p55
      %p57 = scmp.ne.s32.totalorder %s46, %s49
      %p58 = scmp.eq.s32.totalorder %s18, 1
      %p59 = por %p57, %p58
      %p60 = scmp.ne.s32.totalorder %s49, %s50
      %p61 = scmp.eq.s32.totalorder %s18, 0
      %p62 = por %p60, %p61
      %p63 = scmp.ne.s32.totalorder %s49, %s50
      %p64 = scmp.eq.s32.totalorder %s19, 1
      %p65 = por %p63, %p64
      %p67 = scmp.ne.s32.totalorder %s50, %s66
      %p68 = scmp.eq.s32.totalorder %s19, 0
      %p69 = por %p67, %p68
      %s70 = ssub.s32 %s20, %s39
      %s71 = ssub.s32 %s21, %s35
      %s72 = sor.u32 %s70, %s71
      %p73 = scmp.eq.s32.totalorder %s72, 0
      %s75 = sadd.s32 %s74, 1
      %s76 = scalar_select %p73, %s74, %s75
      %p79 = pneg %p73
      %p80 = scmp.eq.s32.totalorder %s13, 1
      %p81 = por %p79, %p80
      %p82 = scmp.ne.s32.totalorder %s74, %s77
      %p83 = scmp.eq.s32.totalorder %s13, 0
      %p84 = por %p82, %p83
      %p85 = scmp.ne.s32.totalorder %s74, %s77
      %p86 = scmp.eq.s32.totalorder %s18, 1
      %p87 = por %p85, %p86
      %p88 = scmp.ne.s32.totalorder %s77, %s78
      %p89 = scmp.eq.s32.totalorder %s18, 0
      %p90 = por %p88, %p89
      %p91 = scmp.ne.s32.totalorder %s77, %s78
      %p92 = scmp.eq.s32.totalorder %s19, 1
      %p93 = por %p91, %p92
      %p95 = scmp.ne.s32.totalorder %s78, %s94
      %p96 = scmp.eq.s32.totalorder %s19, 0
      %p97 = por %p95, %p96
      %p98 = scmp.le.s32.totalorder 1, %s13
      %p99 = scmp.lt.s32.totalorder %s13, 3
      %p100 = pnand %p98, %p99
      %p101 = pneg %p100
      // Predicated region
      $region9: #{tpu_custom_call.1} parent=5 // pred_check
        _
      $region10: #{tpu_custom_call.1} parent=5 // pred_check_branch
        %103 = sbr.rel (%p100) target = $region12
      $region11: #{tpu_custom_call.1} parent=5 // pred_region
        %s104 = ssub.s32 %s13, 1
      $region12: #{tpu_custom_call.1} parent=5 // pred_fallthru
        _
      %p105 = scmp.lt.s32.totalorder %s13, 2
      // Predicated region
      $region13: #{tpu_custom_call.1} parent=5 // pred_check
        %p106 = pneg %p105
      $region14: #{tpu_custom_call.1} parent=5 // pred_check_branch
        %108 = sbr.rel (%p106) target = $region16
      $region15: #{tpu_custom_call.1} parent=5 // pred_region
        // Predicated region
        $region17: #{tpu_custom_call.1} parent=15 // pred_check
          %p109 = pneg %p56
        $region18: #{tpu_custom_call.1} parent=15 // pred_check_branch
          %111 = sbr.rel (%p109) target = $region20
        $region19: #{tpu_custom_call.1} parent=15 // pred_region
          #allocation10 [shape = 'u32[6]{0}', space=smem, size = 0x18, scoped, tag = 'DMA stride descriptor']
          %s112 = sand.u32 %s46, 1
          %s113 = scalar_lea.sflag [#allocation6], %s112
          %s114 = sand.u32 %s46, 1
          %s115 = smul.addr %s114, 96
          %s116 = scalar_lea.vmem [#allocation5], %s115
          %s117 = smul.u32 2, %s20
          %s118 = smul.u32 2, %s22
          %s119 = smul.u32 6, %s21
          %s120 = ssub.s32 1, %s118
          %s121 = smul.u32 128, %s120
          %s122 = smul.u32 %s121, 6
          %s124 = ssub.s32 1536, %s122
          %125 = vsyncadd %s113, %s124
          %p126 = scmp.ne.s32.totalorder 0, %s122
          %s127 = smul.addr %s118, 12
          %s128 = sadd.s32 %s119, %s127
          %s129 = smul.addr %s117, 12
          %s130 = sadd.s32 %s128, %s129
          %s131 = smul.addr %s130, 64
          %s132 = scalar_lea.hbm %s0, %s131
          %s133 = smul.u32 24, %s120
          %s134 = smul.u32 %s133, 2
          %s136 = sshll.u32 1, 14
          %s137 = sxor.u32 4294967295, %s136
          %s139 = sld [smem:[#allocation0]]
          %s140 = sadd.s32 2, %s139
          %s142 = sshll.u32 7, 26
          %s143 = sxor.u32 4294967295, %s142
          %s144 = sand.u32 0, %s143
          %s145 = sshll.u32 %s140, 26
          %s146 = sor.u32 %s144, %s145
          %s147 = sshll.u32 %s116, 4
          %s148 = int_to_ptr.vmem [resolvable:$true] %s147
          %s149 = sshll.u32 %s134, 4
          %154 = sst [smem:[#allocation10]] 768
          %s155 = scalar_lea.smem [#allocation10], 1
          %156 = sst [smem:[%s155]] 768
          %s157 = scalar_lea.smem [#allocation10], 2
          %158 = sst [smem:[%s157]] %s120
          %s159 = scalar_lea.smem [#allocation10], 3
          %160 = sst [smem:[%s159]] 768
          %s161 = scalar_lea.smem [#allocation10], 4
          %162 = sst [smem:[%s161]] 384
          %s163 = scalar_lea.smem [#allocation10], 5
          %164 = sst [smem:[%s163]] 24
          %166 = dma.general (%p126), %s132, %s149, %s148, %s113, 131072, [#allocation10], %s146, 0
        $region20: #{tpu_custom_call.1} parent=15 // pred_fallthru
          _
      $region16: #{tpu_custom_call.1} parent=5 // pred_fallthru
        _
      %p167 = scmp.le.s32.totalorder 1, %s13
      %p168 = scmp.lt.s32.totalorder %s13, 3
      %p169 = pnand %p167, %p168
      %p170 = pneg %p169
      // Predicated region
      $region21: #{tpu_custom_call.1} parent=5 // pred_check
        _
      $region22: #{tpu_custom_call.1} parent=5 // pred_check_branch
        %172 = sbr.rel (%p169) target = $region24
      $region23: #{tpu_custom_call.1} parent=5 // pred_region
        %s173 = ssub.s32 %s13, 1
        %s174 = sand.u32 %s49, 1
        %s175 = scalar_lea.sflag [#allocation6], %s174
        %s176 = sand.u32 %s49, 1
        %s177 = smul.addr %s176, 96
        %s178 = scalar_lea.vmem [#allocation5], %s177
        // Predicated region
        $region25: #{tpu_custom_call.1} parent=23 // pred_check
          %p179 = pneg %p62
        $region26: #{tpu_custom_call.1} parent=23 // pred_check_branch
          %181 = sbr.rel (%p179) target = $region28
        $region27: #{tpu_custom_call.1} parent=23 // pred_region
          %182 = dma.done %s175, 1536
        $region28: #{tpu_custom_call.1} parent=23 // pred_fallthru
          _
        %s183 = sand.u32 %s49, 1
        %s184 = scalar_lea.sflag [#allocation6], %s183
        %s185 = sand.u32 %s49, 1
        %s186 = smul.addr %s185, 96
        %s187 = scalar_lea.vmem [#allocation5], %s186
        %p188 = pneg %p62
        %p189 = pneg %p59
        %p190 = pneg %p90
        %p191 = pneg %p87
        %s192 = sand.u32 %s77, 1
        %s193 = scalar_lea.sflag [#allocation7], %s192
        %s194 = sand.u32 %s77, 1
        %s195 = smul.addr %s194, 12
        %s196 = scalar_lea.vmem [#allocation8], %s195
        %s197 = smul.u32 2, %s23
        %s198 = smul.u32 2, %s25
        %s199 = smul.u32 6, %s24
        %s200 = ssub.s32 1, %s198
        %s201 = smul.u32 128, %s200
        %s202 = smul.u32 %s201, 6
        %s203 = smul.u32 6, %s24
        %p204 = scmp.eq.s32.totalorder %s25, 0
        // Predicated region
        $region29: #{tpu_custom_call.1} parent=23 // pred_check
          %p205 = pneg %p204
        $region30: #{tpu_custom_call.1} parent=23 // pred_check_branch
          %207 = sbr.rel (%p205) target = $region32
        $region31: #{tpu_custom_call.1} parent=23 // pred_region
          %v208 = vld [vmem:[%s178] ss:$4 sm:$0x3f]
          %s209 = scalar_lea.vmem %s178, 48 [#allocation5]
          %v210 = vld [vmem:[%s209] ss:$4 sm:$0x3f]
          %v213 = vcombine.low %v208, %v210
          %v214 = vcombine.high %v208, %v210
          %v216 = vunpack.c.l.s4 1935823168
          %v217 = vunpack.c.0.s8 %v216
          %v218 = vlaneseq
          %v219 = vshrl.u32 %v218, 7
          %v220 = vsub.s32 %v217, %v219
          %v221 = vrot.slane %v213, %v220
          %v223 = vunpack.c.l.s4 1935823168
          %v224 = vunpack.c.0.s8 %v223
          %v225 = vlaneseq
          %v226 = vshrl.u32 %v225, 7
          %v227 = vsub.s32 %v224, %v226
          %v228 = vrot.slane %v214, %v227
          %231 = vst [vmem:[#allocation4] sm:$0xff] %v221
          %232 = vst [vmem:[#allocation4 + $0x8] sm:$0xf] %v228
          %233 = vst [vmem:[#allocation2] sm:$0xff] 0.0
          %234 = vst [vmem:[#allocation2 + $0x8] sm:$0xf] 0.0
          %235 = vst [vmem:[#allocation3] sm:$0xff] 0.0
          %236 = vst [vmem:[#allocation3 + $0x8] sm:$0xf] 0.0
        $region32: #{tpu_custom_call.1} parent=23 // pred_fallthru
          _
        %v237 = vld [vmem:[#allocation4] sm:$0xff]
        %v238 = vld [vmem:[#allocation4 + $0x8] sm:$0xf]
        %v242 = vunpack.c.l.s4 1966171168
        %v243 = vunpack.c.0.s8 %v242
        %v244 = vlaneseq
        %v245 = vshrl.u32 %v244, 7
        %v246 = vsub.s32 %v243, %v245
        %v247 = vrot.slane %v237, %v246
        %v249 = vunpack.c.l.s4 1966171168
        %v250 = vunpack.c.0.s8 %v249
        %v251 = vlaneseq
        %v252 = vshrl.u32 %v251, 7
        %v253 = vsub.s32 %v250, %v252
        %v254 = vrot.slane %v238, %v253
        %v255 = vcombine.low %v247, %v254
        %v256 = vcombine.high %v247, %v254
        %v257 = vld [vmem:[#allocation2] sm:$0xff]
        %v258 = vld [vmem:[#allocation2 + $0x8] sm:$0xf]
        %v259 = vld [vmem:[#allocation3] sm:$0xff]
        %v260 = vld [vmem:[#allocation3 + $0x8] sm:$0xf]
        %s261 = smul.u32 0, 6
        %s262 = smul.addr %s261, 4
        %s263 = scalar_lea.vmem %s178, %s262 [#allocation5]
        %v264 = vld [vmem:[%s263] sm:$0xff]
        %v265 = vld [vmem:[%s263 + $0x8] sm:$0xff]
        %v266 = vld [vmem:[%s263 + $0x10] sm:$0xff]
        %v267 = vld [vmem:[%s263 + $0x18] sm:$0xff]
        %v268 = vld [vmem:[%s263 + $0x20] sm:$0xff]
        %v269 = vld [vmem:[%s263 + $0x28] sm:$0xff]
        %v270 = vld [vmem:[%s263 + $0x30] sm:$0xff]
        %v271 = vld [vmem:[%s263 + $0x38] sm:$0xff]
        %v272 = vld [vmem:[%s263 + $0x40] sm:$0xff]
        %v273 = vld [vmem:[%s263 + $0x48] sm:$0xff]
        %v274 = vld [vmem:[%s263 + $0x50] sm:$0xff]
        %v275 = vld [vmem:[%s263 + $0x58] sm:$0xff]
        %v276 = vlaneseq
        %v277 = vshrl.u32 %v276, 7
        %v278 = vsub.s32 0, %v277
        %v279 = vrot.slane %v255, %v278
        %v280 = vlaneseq
        %v281 = vshrl.u32 %v280, 7
        %v282 = vsub.s32 1, %v281
        %v283 = vrot.slane %v255, %v282
        %v284 = vlaneseq
        %v285 = vshrl.u32 %v284, 7
        %v286 = vsub.s32 2, %v285
        %v287 = vrot.slane %v255, %v286
        %v288 = vlaneseq
        %v289 = vshrl.u32 %v288, 7
        %v290 = vsub.s32 3, %v289
        %v291 = vrot.slane %v255, %v290
        %v292 = vlaneseq
        %v293 = vshrl.u32 %v292, 7
        %v294 = vsub.s32 4, %v293
        %v295 = vrot.slane %v255, %v294
        %v296 = vlaneseq
        %v297 = vshrl.u32 %v296, 7
        %v298 = vsub.s32 5, %v297
        %v299 = vrot.slane %v255, %v298
        %v300 = vlaneseq
        %v301 = vshrl.u32 %v300, 7
        %v302 = vsub.s32 0, %v301
        %v303 = vrot.slane %v256, %v302
        %v304 = vlaneseq
        %v305 = vshrl.u32 %v304, 7
        %v306 = vsub.s32 1, %v305
        %v307 = vrot.slane %v256, %v306
        %v308 = vlaneseq
        %v309 = vshrl.u32 %v308, 7
        %v310 = vsub.s32 2, %v309
        %v311 = vrot.slane %v256, %v310
        %v312 = vlaneseq
        %v313 = vshrl.u32 %v312, 7
        %v314 = vsub.s32 3, %v313
        %v315 = vrot.slane %v256, %v314
        %v316 = vlaneseq
        %v317 = vshrl.u32 %v316, 7
        %v318 = vsub.s32 4, %v317
        %v319 = vrot.slane %v256, %v318
        %v320 = vlaneseq
        %v321 = vshrl.u32 %v320, 7
        %v322 = vsub.s32 5, %v321
        %v323 = vrot.slane %v256, %v322
        %v324 = vcombine.low %v279, %v283
        %v325 = vcombine.high %v279, %v283
        %v326 = vcombine.low %v287, %v291
        %v327 = vcombine.high %v287, %v291
        %v328 = vcombine.low %v295, %v299
        %v329 = vcombine.high %v295, %v299
        %v330 = vcombine.low %v303, %v307
        %v331 = vcombine.high %v303, %v307
        %v332 = vcombine.low %v311, %v315
        %v333 = vcombine.high %v311, %v315
        %v334 = vcombine.low %v319, %v323
        %v335 = vcombine.high %v319, %v323
        %v348 = vsub.f32 %v264, %v324
        %v349 = vsub.f32 %v265, %v326
        %v350 = vsub.f32 %v266, %v328
        %v351 = vsub.f32 %v267, %v325
        %v352 = vsub.f32 %v268, %v327
        %v353 = vsub.f32 %v269, %v329
        %v354 = vsub.f32 %v270, %v330
        %v355 = vsub.f32 %v271, %v332
        %v356 = vsub.f32 %v272, %v334
        %v357 = vsub.f32 %v273, %v331
        %v358 = vsub.f32 %v274, %v333
        %v359 = vsub.f32 %v275, %v335
        %v360 = vlaneseq
        %v361 = vshrl.u32 %v360, 7
        %s362 = smul.u32 %s25, 8
        %s363 = sadd.s32 %s362, 0
        %v364 = vstv %s363
        %v365 = vadd.s32 %v364, %v361
        %vm366 = vcmp.lt.s32.totalorder %v365, 4
        %v367 = vsel %vm366, 1, 0
        %vm368 = vcmp.eq.s32.totalorder %v367, 1
        %v381 = vcombine.low %v348, %v351
        %v382 = vcombine.high %v348, %v351
        %v383 = vcombine.low %v349, %v352
        %v384 = vcombine.high %v349, %v352
        %v385 = vcombine.low %v350, %v353
        %v386 = vcombine.high %v350, %v353
        %v387 = vcombine.low %v354, %v357
        %v388 = vcombine.high %v354, %v357
        %v389 = vcombine.low %v355, %v358
        %v390 = vcombine.high %v355, %v358
        %v391 = vcombine.low %v356, %v359
        %v392 = vcombine.high %v356, %v359
        %v405 = vsel %vm368, %v381, 0.0
        %v406 = vsel %vm368, %v382, 0.0
        %v407 = vsel %vm368, %v383, 0.0
        %v408 = vsel %vm368, %v384, 0.0
        %v409 = vsel %vm368, %v385, 0.0
        %v410 = vsel %vm368, %v386, 0.0
        %v411 = vsel %vm368, %v387, 0.0
        %v412 = vsel %vm368, %v388, 0.0
        %v413 = vsel %vm368, %v389, 0.0
        %v414 = vsel %vm368, %v390, 0.0
        %v415 = vsel %vm368, %v391, 0.0
        %v416 = vsel %vm368, %v392, 0.0
        %v417 = vrot.slane %v405, 4
        %v418 = vadd.f32 %v405, %v417
        %v419 = vrot.slane %v418, 2
        %v420 = vadd.f32 %v418, %v419
        %v421 = vrot.slane %v420, 1
        %v422 = vadd.f32 %v420, %v421
        %v423 = vrot.slane %v406, 4
        %v424 = vadd.f32 %v406, %v423
        %v425 = vrot.slane %v424, 2
        %v426 = vadd.f32 %v424, %v425
        %v427 = vrot.slane %v426, 1
        %v428 = vadd.f32 %v426, %v427
        %v429 = vrot.slane %v407, 4
        %v430 = vadd.f32 %v407, %v429
        %v431 = vrot.slane %v430, 2
        %v432 = vadd.f32 %v430, %v431
        %v433 = vrot.slane %v432, 1
        %v434 = vadd.f32 %v432, %v433
        %v435 = vrot.slane %v408, 4
        %v436 = vadd.f32 %v408, %v435
        %v437 = vrot.slane %v436, 2
        %v438 = vadd.f32 %v436, %v437
        %v439 = vrot.slane %v438, 1
        %v440 = vadd.f32 %v438, %v439
        %v441 = vrot.slane %v409, 4
        %v442 = vadd.f32 %v409, %v441
        %v443 = vrot.slane %v442, 2
        %v444 = vadd.f32 %v442, %v443
        %v445 = vrot.slane %v444, 1
        %v446 = vadd.f32 %v444, %v445
        %v447 = vrot.slane %v410, 4
        %v448 = vadd.f32 %v410, %v447
        %v449 = vrot.slane %v448, 2
        %v450 = vadd.f32 %v448, %v449
        %v451 = vrot.slane %v450, 1
        %v452 = vadd.f32 %v450, %v451
        %v453 = vrot.slane %v411, 4
        %v454 = vadd.f32 %v411, %v453
        %v455 = vrot.slane %v454, 2
        %v456 = vadd.f32 %v454, %v455
        %v457 = vrot.slane %v456, 1
        %v458 = vadd.f32 %v456, %v457
        %v459 = vrot.slane %v412, 4
        %v460 = vadd.f32 %v412, %v459
        %v461 = vrot.slane %v460, 2
        %v462 = vadd.f32 %v460, %v461
        %v463 = vrot.slane %v462, 1
        %v464 = vadd.f32 %v462, %v463
        %v465 = vrot.slane %v413, 4
        %v466 = vadd.f32 %v413, %v465
        %v467 = vrot.slane %v466, 2
        %v468 = vadd.f32 %v466, %v467
        %v469 = vrot.slane %v468, 1
        %v470 = vadd.f32 %v468, %v469
        %v471 = vrot.slane %v414, 4
        %v472 = vadd.f32 %v414, %v471
        %v473 = vrot.slane %v472, 2
        %v474 = vadd.f32 %v472, %v473
        %v475 = vrot.slane %v474, 1
        %v476 = vadd.f32 %v474, %v475
        %v477 = vrot.slane %v415, 4
        %v478 = vadd.f32 %v415, %v477
        %v479 = vrot.slane %v478, 2
        %v480 = vadd.f32 %v478, %v479
        %v481 = vrot.slane %v480, 1
        %v482 = vadd.f32 %v480, %v481
        %v483 = vrot.slane %v416, 4
        %v484 = vadd.f32 %v416, %v483
        %v485 = vrot.slane %v484, 2
        %v486 = vadd.f32 %v484, %v485
        %v487 = vrot.slane %v486, 1
        %v488 = vadd.f32 %v486, %v487
        %v501 = vcombine.low %v422, %v428
        %v502 = vcombine.low %v434, %v440
        %v504 = vunpack.c.l.s4 1983009808
        %v505 = vunpack.c.0.s8 %v504
        %v506 = vlaneseq
        %v507 = vshrl.u32 %v506, 7
        %v508 = vsub.s32 %v505, %v507
        %v509 = vrot.slane %v501, %v508
        %v511 = vunpack.c.l.s4 1983009808
        %v512 = vunpack.c.0.s8 %v511
        %v513 = vlaneseq
        %v514 = vshrl.u32 %v513, 7
        %v515 = vsub.s32 %v512, %v514
        %v516 = vrot.slane %v502, %v515
        %v517 = vcombine.low %v509, %v516
        %v518 = vcombine.low %v446, %v452
        %v520 = vunpack.c.l.s4 1983009808
        %v521 = vunpack.c.0.s8 %v520
        %v522 = vlaneseq
        %v523 = vshrl.u32 %v522, 7
        %v524 = vsub.s32 %v521, %v523
        %v525 = vrot.slane %v518, %v524
        %v526 = vcombine.low %v458, %v464
        %v527 = vcombine.low %v470, %v476
        %v529 = vunpack.c.l.s4 1983009808
        %v530 = vunpack.c.0.s8 %v529
        %v531 = vlaneseq
        %v532 = vshrl.u32 %v531, 7
        %v533 = vsub.s32 %v530, %v532
        %v534 = vrot.slane %v526, %v533
        %v536 = vunpack.c.l.s4 1983009808
        %v537 = vunpack.c.0.s8 %v536
        %v538 = vlaneseq
        %v539 = vshrl.u32 %v538, 7
        %v540 = vsub.s32 %v537, %v539
        %v541 = vrot.slane %v527, %v540
        %v542 = vcombine.low %v534, %v541
        %v543 = vcombine.low %v482, %v488
        %v545 = vunpack.c.l.s4 1983009808
        %v546 = vunpack.c.0.s8 %v545
        %v547 = vlaneseq
        %v548 = vshrl.u32 %v547, 7
        %v549 = vsub.s32 %v546, %v548
        %v550 = vrot.slane %v543, %v549
        %vm551 = vcmask 1044484
        %v552 = vsel %vm551, %v517, %v517
        %vm553 = vcmask 1046534
        %v554 = vsel %vm553, %v517, %v552
        %v555 = vrot.slane %v542, 7
        %vm556 = vcmask 1041409
        %v557 = vsel %vm556, %v555, %v554
        %vm558 = vcmask 1043459
        %v559 = vsel %vm558, %v555, %v557
        %vm560 = vcmask 1045509
        %v561 = vsel %vm560, %v555, %v559
        %vm562 = vcmask 1047559
        %v563 = vsel %vm562, %v555, %v561
        %v564 = vsel %vm551, %v525, %v525
        %v565 = vsel %vm553, %v525, %v564
        %v566 = vrot.slane %v550, 7
        %v567 = vsel %vm556, %v566, %v565
        %v568 = vsel %vm558, %v566, %v567
        %v569 = vsel %vm560, %v566, %v568
        %v570 = vsel %vm562, %v566, %v569
        %v573 = vadd.f32 %v257, %v563
        %v574 = vadd.f32 %v258, %v570
        %v575 = vmul.f32 %v405, %v405
        %v576 = vmul.f32 %v406, %v406
        %v577 = vmul.f32 %v407, %v407
        %v578 = vmul.f32 %v408, %v408
        %v579 = vmul.f32 %v409, %v409
        %v580 = vmul.f32 %v410, %v410
        %v581 = vmul.f32 %v411, %v411
        %v582 = vmul.f32 %v412, %v412
        %v583 = vmul.f32 %v413, %v413
        %v584 = vmul.f32 %v414, %v414
        %v585 = vmul.f32 %v415, %v415
        %v586 = vmul.f32 %v416, %v416
        %v587 = vrot.slane %v575, 4
        %v588 = vadd.f32 %v575, %v587
        %v589 = vrot.slane %v588, 2
        %v590 = vadd.f32 %v588, %v589
        %v591 = vrot.slane %v590, 1
        %v592 = vadd.f32 %v590, %v591
        %v593 = vrot.slane %v576, 4
        %v594 = vadd.f32 %v576, %v593
        %v595 = vrot.slane %v594, 2
        %v596 = vadd.f32 %v594, %v595
        %v597 = vrot.slane %v596, 1
        %v598 = vadd.f32 %v596, %v597
        %v599 = vrot.slane %v577, 4
        %v600 = vadd.f32 %v577, %v599
        %v601 = vrot.slane %v600, 2
        %v602 = vadd.f32 %v600, %v601
        %v603 = vrot.slane %v602, 1
        %v604 = vadd.f32 %v602, %v603
        %v605 = vrot.slane %v578, 4
        %v606 = vadd.f32 %v578, %v605
        %v607 = vrot.slane %v606, 2
        %v608 = vadd.f32 %v606, %v607
        %v609 = vrot.slane %v608, 1
        %v610 = vadd.f32 %v608, %v609
        %v611 = vrot.slane %v579, 4
        %v612 = vadd.f32 %v579, %v611
        %v613 = vrot.slane %v612, 2
        %v614 = vadd.f32 %v612, %v613
        %v615 = vrot.slane %v614, 1
        %v616 = vadd.f32 %v614, %v615
        %v617 = vrot.slane %v580, 4
        %v618 = vadd.f32 %v580, %v617
        %v619 = vrot.slane %v618, 2
        %v620 = vadd.f32 %v618, %v619
        %v621 = vrot.slane %v620, 1
        %v622 = vadd.f32 %v620, %v621
        %v623 = vrot.slane %v581, 4
        %v624 = vadd.f32 %v581, %v623
        %v625 = vrot.slane %v624, 2
        %v626 = vadd.f32 %v624, %v625
        %v627 = vrot.slane %v626, 1
        %v628 = vadd.f32 %v626, %v627
        %v629 = vrot.slane %v582, 4
        %v630 = vadd.f32 %v582, %v629
        %v631 = vrot.slane %v630, 2
        %v632 = vadd.f32 %v630, %v631
        %v633 = vrot.slane %v632, 1
        %v634 = vadd.f32 %v632, %v633
        %v635 = vrot.slane %v583, 4
        %v636 = vadd.f32 %v583, %v635
        %v637 = vrot.slane %v636, 2
        %v638 = vadd.f32 %v636, %v637
        %v639 = vrot.slane %v638, 1
        %v640 = vadd.f32 %v638, %v639
        %v641 = vrot.slane %v584, 4
        %v642 = vadd.f32 %v584, %v641
        %v643 = vrot.slane %v642, 2
        %v644 = vadd.f32 %v642, %v643
        %v645 = vrot.slane %v644, 1
        %v646 = vadd.f32 %v644, %v645
        %v647 = vrot.slane %v585, 4
        %v648 = vadd.f32 %v585, %v647
        %v649 = vrot.slane %v648, 2
        %v650 = vadd.f32 %v648, %v649
        %v651 = vrot.slane %v650, 1
        %v652 = vadd.f32 %v650, %v651
        %v653 = vrot.slane %v586, 4
        %v654 = vadd.f32 %v586, %v653
        %v655 = vrot.slane %v654, 2
        %v656 = vadd.f32 %v654, %v655
        %v657 = vrot.slane %v656, 1
        %v658 = vadd.f32 %v656, %v657
        %v671 = vcombine.low %v592, %v598
        %v672 = vcombine.low %v604, %v610
        %v674 = vunpack.c.l.s4 1983009808
        %v675 = vunpack.c.0.s8 %v674
        %v676 = vlaneseq
        %v677 = vshrl.u32 %v676, 7
        %v678 = vsub.s32 %v675, %v677
        %v679 = vrot.slane %v671, %v678
        %v681 = vunpack.c.l.s4 1983009808
        %v682 = vunpack.c.0.s8 %v681
        %v683 = vlaneseq
        %v684 = vshrl.u32 %v683, 7
        %v685 = vsub.s32 %v682, %v684
        %v686 = vrot.slane %v672, %v685
        %v687 = vcombine.low %v679, %v686
        %v688 = vcombine.low %v616, %v622
        %v690 = vunpack.c.l.s4 1983009808
        %v691 = vunpack.c.0.s8 %v690
        %v692 = vlaneseq
        %v693 = vshrl.u32 %v692, 7
        %v694 = vsub.s32 %v691, %v693
        %v695 = vrot.slane %v688, %v694
        %v696 = vcombine.low %v628, %v634
        %v697 = vcombine.low %v640, %v646
        %v699 = vunpack.c.l.s4 1983009808
        %v700 = vunpack.c.0.s8 %v699
        %v701 = vlaneseq
        %v702 = vshrl.u32 %v701, 7
        %v703 = vsub.s32 %v700, %v702
        %v704 = vrot.slane %v696, %v703
        %v706 = vunpack.c.l.s4 1983009808
        %v707 = vunpack.c.0.s8 %v706
        %v708 = vlaneseq
        %v709 = vshrl.u32 %v708, 7
        %v710 = vsub.s32 %v707, %v709
        %v711 = vrot.slane %v697, %v710
        %v712 = vcombine.low %v704, %v711
        %v713 = vcombine.low %v652, %v658
        %v715 = vunpack.c.l.s4 1983009808
        %v716 = vunpack.c.0.s8 %v715
        %v717 = vlaneseq
        %v718 = vshrl.u32 %v717, 7
        %v719 = vsub.s32 %v716, %v718
        %v720 = vrot.slane %v713, %v719
        %v721 = vsel %vm551, %v687, %v687
        %v722 = vsel %vm553, %v687, %v721
        %v723 = vrot.slane %v712, 7
        %v724 = vsel %vm556, %v723, %v722
        %v725 = vsel %vm558, %v723, %v724
        %v726 = vsel %vm560, %v723, %v725
        %v727 = vsel %vm562, %v723, %v726
        %v728 = vsel %vm551, %v695, %v695
        %v729 = vsel %vm553, %v695, %v728
        %v730 = vrot.slane %v720, 7
        %v731 = vsel %vm556, %v730, %v729
        %v732 = vsel %vm558, %v730, %v731
        %v733 = vsel %vm560, %v730, %v732
        %v734 = vsel %vm562, %v730, %v733
        %v737 = vadd.f32 %v259, %v727
        %v738 = vadd.f32 %v260, %v734
        %739 = vst [vmem:[#allocation2] sm:$0xff] %v573
        %740 = vst [vmem:[#allocation2 + $0x8] sm:$0xf] %v574
        %741 = vst [vmem:[#allocation3] sm:$0xff] %v737
        %742 = vst [vmem:[#allocation3 + $0x8] sm:$0xf] %v738
        // Predicated region
        $region33: #{tpu_custom_call.1} parent=23 // pred_check
          %p743 = pneg %p204
        $region34: #{tpu_custom_call.1} parent=23 // pred_check_branch
          %745 = sbr.rel (%p743) target = $region36
        $region35: #{tpu_custom_call.1} parent=23 // pred_region
          %v746 = vmul.f32 %v573, 0.25
          %v747 = vmul.f32 %v574, 0.25
          %v748 = vmul.f32 %v737, 0.25
          %v749 = vmul.f32 %v738, 0.25
          %v750 = vmul.f32 %v746, %v746
          %v751 = vmul.f32 %v747, %v747
          %v752 = vsub.f32 %v748, %v750
          %v753 = vsub.f32 %v749, %v751
          %v754 = vmax.f32 %v752, 0.0
          %v755 = vmax.f32 %v753, 0.0
          %756 = vst [vmem:[%s196] sm:$0xff] %v754
          %757 = vst [vmem:[%s196 + $0x8] sm:$0xf] %v755
        $region36: #{tpu_custom_call.1} parent=23 // pred_fallthru
          _
        %s758 = sand.u32 %s77, 1
        %s759 = scalar_lea.sflag [#allocation7], %s758
        %s760 = sand.u32 %s77, 1
        %s761 = smul.addr %s760, 12
        %s762 = scalar_lea.vmem [#allocation8], %s761
        // Predicated region
        $region37: #{tpu_custom_call.1} parent=23 // pred_check
          %p763 = pneg %p87
        $region38: #{tpu_custom_call.1} parent=23 // pred_check_branch
          %765 = sbr.rel (%p763) target = $region40
        $region39: #{tpu_custom_call.1} parent=23 // pred_region
          %s766 = smul.u32 6, %s24
          %s768 = ssub.s32 192, 192
          %769 = vsyncadd %s759, %s768
          %s770 = smul.addr %s23, 12
          %s771 = sadd.s32 %s766, %s770
          %s772 = smul.addr %s771, 32
          %s773 = scalar_lea.hbm %s1, %s772
          %s775 = sshll.u32 %s762, 4
          %s776 = int_to_ptr.vmem [resolvable:$true] %s775
          %778 = dma.vmem_to_hbm [thread:$0]  %s776, 192, %s773, %s759
        $region40: #{tpu_custom_call.1} parent=23 // pred_fallthru
          _
      $region24: #{tpu_custom_call.1} parent=5 // pred_fallthru
        _
      %p779 = scmp.le.s32.totalorder 2, %s13
      // Predicated region
      $region41: #{tpu_custom_call.1} parent=5 // pred_check
        %p780 = pneg %p779
      $region42: #{tpu_custom_call.1} parent=5 // pred_check_branch
        %782 = sbr.rel (%p780) target = $region44
      $region43: #{tpu_custom_call.1} parent=5 // pred_region
        %s783 = ssub.s32 %s13, 2
        // Predicated region
        $region45: #{tpu_custom_call.1} parent=43 // pred_check
          %p784 = pneg %p93
        $region46: #{tpu_custom_call.1} parent=43 // pred_check_branch
          %786 = sbr.rel (%p784) target = $region48
        $region47: #{tpu_custom_call.1} parent=43 // pred_region
          %s787 = sand.u32 %s78, 1
          %s788 = scalar_lea.sflag [#allocation7], %s787
          %s789 = sand.u32 %s78, 1
          %s790 = smul.addr %s789, 12
          %s791 = scalar_lea.vmem [#allocation8], %s790
          %792 = dma.done %s788, 192
        $region48: #{tpu_custom_call.1} parent=43 // pred_fallthru
          _
      $region44: #{tpu_custom_call.1} parent=5 // pred_fallthru
        _
    $region6: #{tpu_custom_call.1} parent=1 // loop_footer
      %s17 = sadd.s32 1, %s13
    $region7: #{tpu_custom_call.1} parent=1 // loop_footer_branch
      %12 = sbr.rel target = $region3
    $region8: #{tpu_custom_call.1} parent=1 // loop_exit
      _
    %793 = vsyncpa [#allocation6], 1
    %s794 = scalar_lea.sflag [#allocation6], 1
    %795 = vsyncpa %s794, 1
    %796 = vsyncpa [#allocation7], 1
    %s797 = scalar_lea.sflag [#allocation7], 1
    %798 = vsyncpa %s797, 1

</llo_original>
